<compile_context>
chip_gen: v7x
topology: tpu7x:2x2x1
jax: 0.10.0
libtpu: 0.0.40
codegen_flags: <defaults>
</compile_context>

<pallas_src>
import functools
import math

import jax
import jax.numpy as jnp
from jax import lax
from jax.experimental import pallas as pl
from jax.experimental.pallas import tpu as pltpu

_LANE = 128


# --------------------------------------------------------------------------
# hardware / tiling helpers
# --------------------------------------------------------------------------
def _vmem_capacity_bytes():
    try:
        return int(pltpu.get_tpu_info().vmem_capacity_bytes)
    except Exception:
        return 128 * 1024 * 1024


def _choose_layout(B, F):
    """Pick a lane-dense 2-D compute layout for the flattened (B, F) input.

    Returns (C, k, Fp): row width C, k = feature groups packed per row
    (column c holds feature c % F), Fp = (possibly padded) feature width.
    """
    if F % _LANE == 0:
        return F, 1, F
    if (_LANE % F == 0) and ((B * F) % _LANE == 0) and (F % 8 == 0 or F == 1):
        # free row-major reshape (B, F) -> (B*F/128, 128)
        return _LANE, _LANE // F, F
    if F > _LANE:
        Fp = pl.cdiv(F, _LANE) * _LANE          # pad to unmasked full-lane stores
        return Fp, 1, Fp
    # Small lane-unfriendly F (e.g. 24 with odd batch): keep native width.
    # Stores are partially masked but results stay correct (rare path).
    return F, 1, F


def _row_tile(num_rows, num_cols, tile_bytes):
    """Row-tile height: multiple of 8 (or the full array), ~tile_bytes of f32,
    preferring an exact divisor of num_rows so no boundary masking is needed."""
    cap = (tile_bytes // (num_cols * 4)) // 8 * 8
    cap = max(cap, 8)
    if num_rows <= cap:
        return num_rows
    r = cap
    while r >= max(8, cap // 2):
        if num_rows % r == 0:
            return r
        r -= 8
    return cap  # non-dividing; stats kernel masks, normalize relies on boundary handling


# --------------------------------------------------------------------------
# kernels
# --------------------------------------------------------------------------
def _fold_groups(row, k, f):
    """(1, k*f [+pad]) per-column sums -> (1, f) per-feature sums."""
    if k == 1:
        return row[:, 0:f]
    if f == 1:
        return jnp.sum(row[:, 0:k], axis=-1, keepdims=True)
    acc = row[:, 0:f]
    for g in range(1, k):
        acc = acc + row[:, g * f:(g + 1) * f]
    return acc


def _tile_lanes(v, k, pad_cols, pad_value):
    """(1, f) per-feature row -> (1, C) lane-dense row matching the packed layout."""
    if k > 1:
        v = jnp.tile(v, (1, k))
    if pad_cols > 0:
        v = jnp.concatenate(
            [v, jnp.full((1, pad_cols), pad_value, dtype=jnp.float32)], axis=-1)
    return v


def _fused_kernel(inv_db_ref, x_ref, rs_ref, new_rs_ref, out_ref, *,
                  weight, num_feat, group_k, batch, pad_cols):
    """Single-pass PopArt: x stays resident in VMEM; one HBM read, one write."""
    x = x_ref[...].astype(jnp.float32)                       # (R, C)
    col_sum = jnp.sum(x, axis=0, keepdims=True)              # (1, C)
    col_sq = jnp.sum(x * x, axis=0, keepdims=True)           # (1, C)

    inv_n = jnp.float32(1.0 / batch)
    bm = _fold_groups(col_sum, group_k, num_feat) * inv_n    # (1, F)
    bsq = _fold_groups(col_sq, group_k, num_feat) * inv_n    # (1, F)

    w = jnp.float32(weight)
    omw = jnp.float32(1.0 - weight)
    new_rm = rs_ref[0:1, :] * w + bm * omw
    new_rmsq = rs_ref[1:2, :] * w + bsq * omw
    new_rs_ref[0:1, :] = new_rm
    new_rs_ref[1:2, :] = new_rmsq

    inv_db = inv_db_ref[0]                                   # clamped 1/debias (SMEM)
    mean = new_rm * inv_db
    msq = new_rmsq * inv_db
    var = jnp.maximum(msq - mean * mean, jnp.float32(0.01))
    inv_std = lax.rsqrt(var)                                 # hoisted: (1, F) only

    mean_c = _tile_lanes(mean, group_k, pad_cols, 0.0)       # (1, C)
    istd_c = _tile_lanes(inv_std, group_k, pad_cols, 1.0)    # (1, C)
    out_ref[...] = ((x - mean_c) * istd_c).astype(out_ref.dtype)


def _stats_kernel(x_ref, part_ref, *, sub, tile_rows, total_rows, cols, needs_mask):
    """Per-column partial sums of x and x*x into a (sub, C)-wide accumulator.

    Grid = (P, S): leading axis "parallel" (per-core slice of row tiles on v7x),
    trailing axis "arbitrary" (reduction); partials written once per core slice.
    """
    p = pl.program_id(0)
    s = pl.program_id(1)

    @pl.when(s == 0)
    def _init():
        part_ref[...] = jnp.zeros_like(part_ref)

    x = x_ref[...].astype(jnp.float32)                       # (tile_rows, C)
    if needs_mask:
        base = (p * pl.num_programs(1) + s) * tile_rows
        rid = base + lax.broadcasted_iota(jnp.int32, (tile_rows, 1), 0)
        x = jnp.where(rid < total_rows, x, jnp.float32(0.0))

    if sub == 8:
        # whole-vreg adds only; the single cross-sublane fold happens in the wrapper
        xr = x.reshape(tile_rows // 8, 8, cols)
        part_ref[0, 0, :, :] += jnp.sum(xr, axis=0)
        part_ref[0, 1, :, :] += jnp.sum(xr * xr, axis=0)
    else:
        part_ref[0, 0, :, :] += jnp.sum(x, axis=0, keepdims=True)
        part_ref[0, 1, :, :] += jnp.sum(x * x, axis=0, keepdims=True)


def _normalize_kernel(x_ref, norm_ref, out_ref):
    """out = (x - mean) * inv_std — pure VPU, full-lane-width contiguous tiles."""
    mean = norm_ref[0:1, :]
    inv_std = norm_ref[1:2, :]
    out_ref[...] = ((x_ref[...].astype(jnp.float32) - mean) * inv_std).astype(out_ref.dtype)


# --------------------------------------------------------------------------
# pallas_call wrappers
# --------------------------------------------------------------------------
def _stats_call(x2d, tile_bytes, vmem_limit):
    R, C = x2d.shape
    tr = _row_tile(R, C, tile_bytes)
    n_tiles = pl.cdiv(R, tr)
    needs_mask = (R % tr) != 0
    P = 2 if (n_tiles >= 2 and n_tiles % 2 == 0) else 1       # both TCs busy on v7x
    S = n_tiles // P
    sub = 8 if (tr % 8 == 0) else 1

    kern = functools.partial(_stats_kernel, sub=sub, tile_rows=tr,
                             total_rows=R, cols=C, needs_mask=needs_mask)
    return pl.pallas_call(
        kern,
        out_shape=jax.ShapeDtypeStruct((P, 2, sub, C), jnp.float32),
        grid=(P, S),
        in_specs=[pl.BlockSpec((tr, C), lambda p, s: (p * S + s, 0))],
        out_specs=pl.BlockSpec((1, 2, sub, C), lambda p, s: (p, 0, 0, 0)),
        compiler_params=pltpu.CompilerParams(
            dimension_semantics=("parallel", "arbitrary"),
            vmem_limit_bytes=vmem_limit),
    )(x2d)


def _normalize_call(x2d, norm_c, out_dtype, tile_bytes, vmem_limit):
    R, C = x2d.shape
    tr = _row_tile(R, C, tile_bytes)
    return pl.pallas_call(
        _normalize_kernel,
        out_shape=jax.ShapeDtypeStruct((R, C), out_dtype),
        grid=(pl.cdiv(R, tr),),
        in_specs=[pl.BlockSpec((tr, C), lambda i: (i, 0)),    # full-width row tiles
                  pl.BlockSpec((2, C), lambda i: (0, 0))],
        out_specs=pl.BlockSpec((tr, C), lambda i: (i, 0)),
        compiler_params=pltpu.CompilerParams(
            dimension_semantics=("parallel",),
            vmem_limit_bytes=vmem_limit),
    )(x2d, norm_c)


def _norm_row(rm, rmsq, db, epsilon, k, pad_cols):
    """(F,) running stats -> (2, C) [mean, inv_std] row in the packed layout."""
    dbc = jnp.maximum(db, epsilon)
    mean = rm / dbc
    var = jnp.maximum(rmsq / dbc - mean * mean, 0.01)
    inv_std = lax.rsqrt(var)
    mean_c = jnp.tile(mean, k) if k > 1 else mean
    istd_c = jnp.tile(inv_std, k) if k > 1 else inv_std
    if pad_cols:
        mean_c = jnp.concatenate([mean_c, jnp.zeros((pad_cols,), jnp.float32)])
        istd_c = jnp.concatenate([istd_c, jnp.ones((pad_cols,), jnp.float32)])
    return jnp.stack([mean_c, istd_c], axis=0)                # (2, C)


def _unpack_out(out2d, B, F, Fp, orig_shape):
    out = out2d.reshape(B, Fp)
    if Fp != F:
        out = out[:, :F]
    return out.reshape(orig_shape)


# --------------------------------------------------------------------------
# public entry point
# --------------------------------------------------------------------------
def popart_forward(x, running_mean, running_mean_sq, debiasing_term, *,
                   norm_axes=1, beta=0.99999, per_element_update=False,
                   epsilon=1e-5, train=True, out_dtype=None,
                   force_two_pass=False, max_tile_bytes=None):
    """PopArt.forward.  Returns (out, new_running_mean, new_running_mean_sq,
    new_debiasing_term).  Internal compute is f32; `out_dtype` defaults to the
    input dtype (identical to the PyTorch module for the usual f32 inputs)."""
    batch_shape = x.shape[:norm_axes]
    feat_shape = x.shape[norm_axes:]
    B = int(math.prod(batch_shape))
    F = int(math.prod(feat_shape))
    out_dtype = x.dtype if out_dtype is None else out_dtype
    w = float(beta) ** B if per_element_update else float(beta)

    # lane-dense compute layout
    C, k, Fp = _choose_layout(B, F)
    pad_cols = C - k * F
    xf = x.reshape(B, F)
    x_work = jnp.pad(xf, ((0, 0), (0, Fp - F))) if Fp != F else xf
    R = (B * Fp) // C
    x2d = x_work.reshape(R, C)

    rm = running_mean.reshape(F).astype(jnp.float32)
    rmsq = running_mean_sq.reshape(F).astype(jnp.float32)
    db = jnp.asarray(debiasing_term, jnp.float32)

    # VMEM budgeting (chip-aware: ~64 MiB / 8 MiB tiles on v5e/v6e, 32/4 on v7x)
    vmem_cap = _vmem_capacity_bytes()
    vmem_limit = min(vmem_cap // 2, 64 * 1024 * 1024)
    tile_bytes = max(1 << 20, vmem_limit // 8) if max_tile_bytes is None else max_tile_bytes

    if not train:
        norm_c = _norm_row(rm, rmsq, db, epsilon, k, pad_cols)
        out2d = _normalize_call(x2d, norm_c, out_dtype, tile_bytes, vmem_limit)
        out = _unpack_out(out2d, B, F, Fp, x.shape)
        return out, running_mean, running_mean_sq, debiasing_term

    # debiasing-term update is data independent
    new_db = db * w + (1.0 - w)

    x_bytes = R * C * 4
    out_bytes = R * C * jnp.dtype(out_dtype).itemsize
    use_fused = (not force_two_pass) and (2 * (x_bytes + out_bytes) <= vmem_limit)

    if use_fused:
        # ---- fused single pass: one HBM read of x, one write of out ----
        inv_db = (1.0 / jnp.maximum(new_db, epsilon)).astype(jnp.float32).reshape(1)
        rs = jnp.stack([rm, rmsq], axis=0)                    # (2, F)
        fused = functools.partial(_fused_kernel, weight=w, num_feat=F,
                                  group_k=k, batch=B, pad_cols=pad_cols)
        new_rs, out2d = pl.pallas_call(
            fused,
            out_shape=(jax.ShapeDtypeStruct((2, F), jnp.float32),
                       jax.ShapeDtypeStruct((R, C), out_dtype)),
            grid=(1,),
            in_specs=[
                pl.BlockSpec(memory_space=pltpu.MemorySpace.SMEM),   # inv_db scalar
                pl.BlockSpec((R, C), lambda i: (0, 0)),              # x, resident
                pl.BlockSpec((2, F), lambda i: (0, 0)),              # packed running stats
            ],
            out_specs=(
                pl.BlockSpec((2, F), lambda i: (0, 0)),
                pl.BlockSpec((R, C), lambda i: (0, 0)),
            ),
            compiler_params=pltpu.CompilerParams(
                dimension_semantics=("arbitrary",),
                vmem_limit_bytes=vmem_limit),
        )(inv_db, x2d, rs)
        new_rm, new_rmsq = new_rs[0], new_rs[1]
    else:
        # ---- pass 1: per-core per-column partial sums; tiny combine in wrapper ----
        partials = _stats_call(x2d, tile_bytes, vmem_limit)   # (P, 2, sub, C)
        col = jnp.sum(partials, axis=(0, 2))                  # (2, C)
        sum_f = col[0, : k * F].reshape(k, F).sum(axis=0)     # (F,)
        sq_f = col[1, : k * F].reshape(k, F).sum(axis=0)      # (F,)
        new_rm = rm * w + (sum_f / B) * (1.0 - w)
        new_rmsq = rmsq * w + (sq_f / B) * (1.0 - w)
        # ---- pass 2: normalize with full-width row tiles ----
        norm_c = _norm_row(new_rm, new_rmsq, new_db, epsilon, k, pad_cols)
        out2d = _normalize_call(x2d, norm_c, out_dtype, tile_bytes, vmem_limit)

    out = _unpack_out(out2d, B, F, Fp, x.shape)
    return (out, new_rm.reshape(feat_shape), new_rmsq.reshape(feat_shape),
            new_db.reshape(()))


# --------------------------------------------------------------------------
# pure-JAX reference (matches the PyTorch forward)
# --------------------------------------------------------------------------
def popart_reference(x, rm, rmsq, db, *, beta=0.99999, epsilon=1e-5, train=True):
    x = x.astype(jnp.float32)
    if train:
        bm = jnp.mean(x, axis=0)
        bsq = jnp.mean(x * x, axis=0)
        new_rm = rm * beta + bm * (1.0 - beta)
        new_rmsq = rmsq * beta + bsq * (1.0 - beta)
        new_db = db * beta + (1.0 - beta)
    else:
        new_rm, new_rmsq, new_db = rm, rmsq, db
    dbc = jnp.maximum(new_db, epsilon)
    mean = new_rm / dbc
    var = jnp.maximum(new_rmsq / dbc - mean ** 2, 0.01)
    out = (x - mean[None, :]) / jnp.sqrt(var)[None, :]
    return out, new_rm, new_rmsq, new_db


if __name__ == "__main__":
    key = jax.random.PRNGKey(0)
    k1, k2 = jax.random.split(key)

    # --- small demo shape: PopArt(input_shape=(32,)), batch 8 -> fused single-pass path
    B, F = 8, 32
    x = jax.random.normal(k1, (B, F), dtype=jnp.float32)
    rm0 = jnp.zeros((F,), jnp.float32)
    rmsq0 = jnp.zeros((F,), jnp.float32)
    db0 = jnp.float32(0.0)

    out, nrm, nrmsq, ndb = popart_forward(x, rm0, rmsq0, db0)
    jax.block_until_ready(out)
    r_out, r_rm, r_rmsq, r_db = popart_reference(x, rm0, rmsq0, db0)
    assert jnp.allclose(out, r_out, atol=1e-5, rtol=1e-5)
    assert jnp.allclose(nrm, r_rm, atol=1e-7)
    assert jnp.allclose(nrmsq, r_rmsq, atol=1e-7)
    assert jnp.allclose(ndb, r_db, atol=1e-7)

    # --- eval (train=False) path: normalize-only kernel with the updated stats
    out_eval, _, _, _ = popart_forward(x, nrm, nrmsq, ndb, train=False)
    jax.block_until_ready(out_eval)
    r_eval, _, _, _ = popart_reference(x, nrm, nrmsq, ndb, train=False)
    assert jnp.allclose(out_eval, r_eval, atol=1e-5, rtol=1e-5)

    # --- larger shape, forced two-pass path with small tiles so the multi-step,
    #     megacore-structured reduction grid and the row-tiled normalize are exercised
    B2, F2 = 512, 256
    x2 = jax.random.normal(k2, (B2, F2), dtype=jnp.float32)
    rm2 = jnp.zeros((F2,), jnp.float32)
    rmsq2 = jnp.zeros((F2,), jnp.float32)
    out2, nrm2, nrmsq2, ndb2 = popart_forward(
        x2, rm2, rmsq2, jnp.float32(0.0),
        force_two_pass=True, max_tile_bytes=64 * 1024)
    jax.block_until_ready(out2)
    r_out2, r_rm2, r_rmsq2, r_db2 = popart_reference(x2, rm2, rmsq2, jnp.float32(0.0))
    assert jnp.allclose(out2, r_out2, atol=1e-5, rtol=1e-5)
    assert jnp.allclose(nrm2, r_rm2, atol=1e-7)
    assert jnp.allclose(nrmsq2, r_rmsq2, atol=1e-7)
    assert jnp.allclose(ndb2, r_db2, atol=1e-7)

    print("KERNEL_OK")
</pallas_src>

<mosaic_0001>
module attributes {stable_mosaic.version = 11 : i64} {
  func.func @_fused_kernel(%arg0: i32, %arg1: memref<1xf32, #tpu.memory_space<smem>>, %arg2: memref<2x128xf32, #tpu.memory_space<vmem>>, %arg3: memref<2x32xf32, #tpu.memory_space<vmem>>, %arg4: memref<2x32xf32, #tpu.memory_space<vmem>>, %arg5: memref<2x128xf32, #tpu.memory_space<vmem>>) attributes {dimension_semantics = [#tpu.dimension_semantics<arbitrary>], iteration_bounds = array<i64: 1>, scalar_prefetch = 0 : i64, scratch_operands = 0 : i64, tpu.core_type = #tpu.core_type<tc>, window_params = [{transform_indices = @transform_0, window_bounds = array<i64: 1>}, {pipeline_mode = #tpu.pipeline_mode<synchronous>, transform_indices = @transform_1, window_bounds = array<i64: 2, 128>}, {pipeline_mode = #tpu.pipeline_mode<synchronous>, transform_indices = @transform_2, window_bounds = array<i64: 2, 32>}, {pipeline_mode = #tpu.pipeline_mode<synchronous>, transform_indices = @transform_3, window_bounds = array<i64: 2, 32>}, {pipeline_mode = #tpu.pipeline_mode<synchronous>, transform_indices = @transform_4, window_bounds = array<i64: 2, 128>}]} {
    %c0 = arith.constant 0 : index
    %c0_0 = arith.constant 0 : index
    %0 = vector.load %arg2[%c0, %c0_0] : memref<2x128xf32, #tpu.memory_space<vmem>>, vector<2x128xf32>
    %cst = arith.constant dense<0.000000e+00> : vector<128xf32>
    %1 = vector.multi_reduction <add>, %0, %cst [0] : vector<2x128xf32> to vector<128xf32>
    %2 = vector.shape_cast %1 : vector<128xf32> to vector<1x128xf32>
    %3 = arith.mulf %0, %0 : vector<2x128xf32>
    %cst_1 = arith.constant dense<0.000000e+00> : vector<128xf32>
    %4 = vector.multi_reduction <add>, %3, %cst_1 [0] : vector<2x128xf32> to vector<128xf32>
    %5 = vector.shape_cast %4 : vector<128xf32> to vector<1x128xf32>
    %6 = vector.extract_strided_slice %2 {offsets = [0, 0], sizes = [1, 32], strides = [1, 1]} : vector<1x128xf32> to vector<1x32xf32>
    %7 = vector.extract_strided_slice %2 {offsets = [0, 32], sizes = [1, 32], strides = [1, 1]} : vector<1x128xf32> to vector<1x32xf32>
    %8 = arith.addf %6, %7 : vector<1x32xf32>
    %9 = vector.extract_strided_slice %2 {offsets = [0, 64], sizes = [1, 32], strides = [1, 1]} : vector<1x128xf32> to vector<1x32xf32>
    %10 = arith.addf %8, %9 : vector<1x32xf32>
    %11 = vector.extract_strided_slice %2 {offsets = [0, 96], sizes = [1, 32], strides = [1, 1]} : vector<1x128xf32> to vector<1x32xf32>
    %12 = arith.addf %10, %11 : vector<1x32xf32>
    %cst_2 = arith.constant 1.250000e-01 : f32
    %13 = vector.broadcast %cst_2 : f32 to vector<1x32xf32>
    %14 = arith.mulf %12, %13 : vector<1x32xf32>
    %15 = vector.extract_strided_slice %5 {offsets = [0, 0], sizes = [1, 32], strides = [1, 1]} : vector<1x128xf32> to vector<1x32xf32>
    %16 = vector.extract_strided_slice %5 {offsets = [0, 32], sizes = [1, 32], strides = [1, 1]} : vector<1x128xf32> to vector<1x32xf32>
    %17 = arith.addf %15, %16 : vector<1x32xf32>
    %18 = vector.extract_strided_slice %5 {offsets = [0, 64], sizes = [1, 32], strides = [1, 1]} : vector<1x128xf32> to vector<1x32xf32>
    %19 = arith.addf %17, %18 : vector<1x32xf32>
    %20 = vector.extract_strided_slice %5 {offsets = [0, 96], sizes = [1, 32], strides = [1, 1]} : vector<1x128xf32> to vector<1x32xf32>
    %21 = arith.addf %19, %20 : vector<1x32xf32>
    %cst_3 = arith.constant 1.250000e-01 : f32
    %22 = vector.broadcast %cst_3 : f32 to vector<1x32xf32>
    %23 = arith.mulf %21, %22 : vector<1x32xf32>
    %c0_4 = arith.constant 0 : index
    %c0_5 = arith.constant 0 : index
    %24 = vector.load %arg3[%c0_4, %c0_5] : memref<2x32xf32, #tpu.memory_space<vmem>>, vector<1x32xf32>
    %cst_6 = arith.constant 0.999989986 : f32
    %25 = vector.broadcast %cst_6 : f32 to vector<1x32xf32>
    %26 = arith.mulf %24, %25 : vector<1x32xf32>
    %cst_7 = arith.constant 9.99999974E-6 : f32
    %27 = vector.broadcast %cst_7 : f32 to vector<1x32xf32>
    %28 = arith.mulf %14, %27 : vector<1x32xf32>
    %29 = arith.addf %26, %28 : vector<1x32xf32>
    %c1 = arith.constant 1 : index
    %c0_8 = arith.constant 0 : index
    %30 = vector.load %arg3[%c1, %c0_8] : memref<2x32xf32, #tpu.memory_space<vmem>>, vector<1x32xf32>
    %cst_9 = arith.constant 0.999989986 : f32
    %31 = vector.broadcast %cst_9 : f32 to vector<1x32xf32>
    %32 = arith.mulf %30, %31 : vector<1x32xf32>
    %cst_10 = arith.constant 9.99999974E-6 : f32
    %33 = vector.broadcast %cst_10 : f32 to vector<1x32xf32>
    %34 = arith.mulf %23, %33 : vector<1x32xf32>
    %35 = arith.addf %32, %34 : vector<1x32xf32>
    %c0_11 = arith.constant 0 : index
    %c0_12 = arith.constant 0 : index
    %36 = vector.load %arg4[%c0_11, %c0_12] : memref<2x32xf32, #tpu.memory_space<vmem>>, vector<1x32xf32>
    tpu.vector_store %arg4[%c0_11, %c0_12], %29 {strides = array<i32>} : memref<2x32xf32, #tpu.memory_space<vmem>>, vector<1x32xf32>,
    %c1_13 = arith.constant 1 : index
    %c0_14 = arith.constant 0 : index
    %37 = vector.load %arg4[%c1_13, %c0_14] : memref<2x32xf32, #tpu.memory_space<vmem>>, vector<1x32xf32>
    tpu.vector_store %arg4[%c1_13, %c0_14], %35 {strides = array<i32>} : memref<2x32xf32, #tpu.memory_space<vmem>>, vector<1x32xf32>,
    %c0_15 = arith.constant 0 : index
    %38 = memref.load %arg1[%c0_15] : memref<1xf32, #tpu.memory_space<smem>>
    %39 = vector.broadcast %38 : f32 to vector<1x32xf32>
    %40 = arith.mulf %29, %39 : vector<1x32xf32>
    %41 = vector.broadcast %38 : f32 to vector<1x32xf32>
    %42 = arith.mulf %35, %41 : vector<1x32xf32>
    %43 = arith.mulf %40, %40 : vector<1x32xf32>
    %44 = arith.subf %42, %43 : vector<1x32xf32>
    %cst_16 = arith.constant 0.00999999977 : f32
    %45 = vector.broadcast %cst_16 : f32 to vector<1x32xf32>
    %46 = arith.maximumf %44, %45 : vector<1x32xf32>
    %47 = math.rsqrt %46 : vector<1x32xf32>
    %48 = tpu.concatenate %40, %40, %40, %40 in 1 : vector<1x32xf32>, vector<1x32xf32>, vector<1x32xf32>, vector<1x32xf32> -> vector<1x128xf32>
    %49 = tpu.concatenate %47, %47, %47, %47 in 1 : vector<1x32xf32>, vector<1x32xf32>, vector<1x32xf32>, vector<1x32xf32> -> vector<1x128xf32>
    %50 = vector.broadcast %48 : vector<1x128xf32> to vector<2x128xf32>
    %51 = arith.subf %0, %50 : vector<2x128xf32>
    %52 = vector.broadcast %49 : vector<1x128xf32> to vector<2x128xf32>
    %53 = arith.mulf %51, %52 : vector<2x128xf32>
    %c0_17 = arith.constant 0 : index
    %c0_18 = arith.constant 0 : index
    %54 = vector.load %arg5[%c0_17, %c0_18] : memref<2x128xf32, #tpu.memory_space<vmem>>, vector<2x128xf32>
    tpu.vector_store %arg5[%c0_17, %c0_18], %53 {strides = array<i32>} : memref<2x128xf32, #tpu.memory_space<vmem>>, vector<2x128xf32>,
    return
  }
  func.func @transform_0(%arg0: i32) -> i32 {
    %c0_i32 = arith.constant 0 : i32
    %c0_i32_0 = arith.constant 0 : i32
    return %c0_i32 : i32
  }
  func.func @transform_1(%arg0: i32) -> (i32, i32) {
    %c0_i32 = arith.constant 0 : i32
    %c0_i32_0 = arith.constant 0 : i32
    %c0_i32_1 = arith.constant 0 : i32
    return %c0_i32, %c0_i32_0 : i32, i32
  }
  func.func @transform_2(%arg0: i32) -> (i32, i32) {
    %c0_i32 = arith.constant 0 : i32
    %c0_i32_0 = arith.constant 0 : i32
    %c0_i32_1 = arith.constant 0 : i32
    return %c0_i32, %c0_i32_0 : i32, i32
  }
  func.func @transform_3(%arg0: i32) -> (i32, i32) {
    %c0_i32 = arith.constant 0 : i32
    %c0_i32_0 = arith.constant 0 : i32
    %c0_i32_1 = arith.constant 0 : i32
    return %c0_i32, %c0_i32_0 : i32, i32
  }
  func.func @transform_4(%arg0: i32) -> (i32, i32) {
    %c0_i32 = arith.constant 0 : i32
    %c0_i32_0 = arith.constant 0 : i32
    %c0_i32_1 = arith.constant 0 : i32
    return %c0_i32, %c0_i32_0 : i32, i32
  }
}

</mosaic_0001>

<llo_original>
// kernel: tpu_custom_call.1
$region0: #{tpu_custom_call.1}
  #allocation0 [shape = 'u32[]', space=smem, size = 0x4, offset = 0x4, fixed_abs, tag = 'smem constant byte address 0x4 - core index']
  #allocation1 [shape = 'u32[144,128]{1,0:T(1,128)}', space=vmem, size = 0x12000, scoped, tag = 'internal scratch']
  #allocation2 [shape = 'f32[1]{0:T(128)S(6)}', space=smem, size = 0x200, scoped, tag = 'scoped memory for tpu_custom_call.1']
  %s0 = inlined_call_operand.<no memory space> [shape: f32[1], index: 0, kind: input, shape index: {}]
  %s1 = inlined_call_operand.hbm [shape: f32[2,128], index: 1, kind: input, shape index: {}]
  %s2 = inlined_call_operand.hbm [shape: f32[2,32], index: 2, kind: input, shape index: {}]
  %s3 = inlined_call_operand.hbm [shape: f32[2,32], index: 3, kind: output, shape index: {0}]
  %s4 = inlined_call_operand.hbm [shape: f32[2,128], index: 4, kind: output, shape index: {1}]
  %5 = xla_tuple %s3, %s4
  %s6 = sld [smem:[#allocation0]]
  $region38: #{tpu_custom_call.1} parent=0
    _
  %s8 = ssub.s32 1, %s6
  %s9 = scalar_select 0, %s8, %s6
  %10 = sst [smem:[#allocation2]] %s0
  $region1: #{tpu_custom_call.1} parent=0
    #allocation3 [shape = 'u8[1024]{0}', space=vmem, size = 0x400, scoped, tag = 'input window, operand 1, single buffered']
    #allocation4 [shape = 's32[1]{0}', space=sflag, size = 0x4, scoped, tag = 'scoped memory for tpu_custom_call.1']
    #allocation5 [shape = 's32[1]{0}', space=sflag, size = 0x4, scoped, tag = 'scoped memory for tpu_custom_call.1']
    #allocation6 [shape = 'u8[1024]{0}', space=vmem, size = 0x400, scoped, tag = 'input window, operand 2, single buffered']
    #allocation7 [shape = 's32[1]{0}', space=sflag, size = 0x4, scoped, tag = 'scoped memory for tpu_custom_call.1']
    #allocation8 [shape = 'u8[1024]{0}', space=vmem, size = 0x400, scoped, tag = 'output window, operand 0, single buffered']
    #allocation9 [shape = 'u8[1024]{0}', space=vmem, size = 0x400, scoped, tag = 'output window, operand 1, single buffered']
    #allocation10 [shape = 's32[1]{0}', space=sflag, size = 0x4, scoped, tag = 'scoped memory for tpu_custom_call.1']
    %11 = vsyncpa [#allocation4], 0
    %12 = vsyncpa [#allocation7], 0
    %13 = vsyncpa [#allocation5], 0
    %14 = vsyncpa [#allocation10], 0
    // Predicated region
    $region2: #{tpu_custom_call.1} parent=1 // pred_check
      _
    $region3: #{tpu_custom_call.1} parent=1 // pred_check_branch
      %16 = sbr.rel (0) target = $region5
    $region4: #{tpu_custom_call.1} parent=1 // pred_region
      _
    $region5: #{tpu_custom_call.1} parent=1 // pred_fallthru
      _
    // Predicated region
    $region6: #{tpu_custom_call.1} parent=1 // pred_check
      _
    $region7: #{tpu_custom_call.1} parent=1 // pred_check_branch
      %18 = sbr.rel (0) target = $region9
    $region8: #{tpu_custom_call.1} parent=1 // pred_region
      %s20 = ssub.s32 32, 32
      %21 = vsyncadd [#allocation4], %s20
      %s23 = sshll.u32 [#allocation3], 4
      %s24 = int_to_ptr.vmem [resolvable:$true] %s23
      %26 = dma.hbm_to_vmem [thread:$0]  %s1, 32, %s24, [#allocation4]
    $region9: #{tpu_custom_call.1} parent=1 // pred_fallthru
      _
    // Predicated region
    $region10: #{tpu_custom_call.1} parent=1 // pred_check
      _
    $region11: #{tpu_custom_call.1} parent=1 // pred_check_branch
      %28 = sbr.rel (0) target = $region13
    $region12: #{tpu_custom_call.1} parent=1 // pred_region
      %s30 = ssub.s32 32, 32
      %31 = vsyncadd [#allocation7], %s30
      %s33 = sshll.u32 [#allocation6], 4
      %s34 = int_to_ptr.vmem [resolvable:$true] %s33
      %36 = dma.hbm_to_vmem [thread:$0]  %s2, 32, %s34, [#allocation7]
    $region13: #{tpu_custom_call.1} parent=1 // pred_fallthru
      _
    // Predicated region
    $region14: #{tpu_custom_call.1} parent=1 // pred_check
      _
    $region15: #{tpu_custom_call.1} parent=1 // pred_check_branch
      %38 = sbr.rel (0) target = $region17
    $region16: #{tpu_custom_call.1} parent=1 // pred_region
      %39 = dma.done [#allocation4], 32
    $region17: #{tpu_custom_call.1} parent=1 // pred_fallthru
      _
    // Predicated region
    $region18: #{tpu_custom_call.1} parent=1 // pred_check
      _
    $region19: #{tpu_custom_call.1} parent=1 // pred_check_branch
      %41 = sbr.rel (0) target = $region21
    $region20: #{tpu_custom_call.1} parent=1 // pred_region
      %42 = dma.done [#allocation7], 32
    $region21: #{tpu_custom_call.1} parent=1 // pred_fallthru
      _
    %v43 = vld [vmem:[#allocation3] sm:$0x3]
    %vm44 = vcmask 1041408
    %v45 = vsel %vm44, %v43, 0.0
    %v46 = vrot.slane %v45, 4
    %v47 = vadd.f32 %v45, %v46
    %v48 = vrot.slane %v47, 2
    %v49 = vadd.f32 %v47, %v48
    %v50 = vrot.slane %v49, 1
    %v51 = vadd.f32 %v49, %v50
    %v52 = vmul.f32 %v43, %v43
    %v53 = vsel %vm44, %v52, 0.0
    %v54 = vrot.slane %v53, 4
    %v55 = vadd.f32 %v53, %v54
    %v56 = vrot.slane %v55, 2
    %v57 = vadd.f32 %v55, %v56
    %v58 = vrot.slane %v57, 1
    %v59 = vadd.f32 %v57, %v58
    %61 = vrot.lane.b32.xlu0 %v51, 96
    %v62 = vpop.permute.xlu0 %61
    %v64 = vadd.f32 %v51, %v62
    %65 = vrot.lane.b32.xlu0 %v51, 64
    %v66 = vpop.permute.xlu0 %65
    %v68 = vadd.f32 %v64, %v66
    %69 = vrot.lane.b32.xlu0 %v51, 32
    %v70 = vpop.permute.xlu0 %69
    %v72 = vadd.f32 %v68, %v70
    %v73 = vmul.f32 %v72, 0.125
    %75 = vrot.lane.b32.xlu0 %v59, 96
    %v76 = vpop.permute.xlu0 %75
    %v78 = vadd.f32 %v59, %v76
    %79 = vrot.lane.b32.xlu0 %v59, 64
    %v80 = vpop.permute.xlu0 %79
    %v82 = vadd.f32 %v78, %v80
    %83 = vrot.lane.b32.xlu0 %v59, 32
    %v84 = vpop.permute.xlu0 %83
    %v86 = vadd.f32 %v82, %v84
    %v87 = vmul.f32 %v86, 0.125
    %v88 = vld [vmem:[#allocation6] sm:$0x1]
    %v89 = vmul.f32 %v88, 0.99999
    %v90 = vmul.f32 %v73, 1e-05
    %v91 = vadd.f32 %v89, %v90
    %v92 = vld [vmem:[#allocation6 + $0x1] sm:$0x1]
    %v93 = vmul.f32 %v92, 0.99999
    %v94 = vmul.f32 %v87, 1e-05
    %v95 = vadd.f32 %v93, %v94
    %vm96 = vcmask 253952
    %97 = vst.msk [vmem:[#allocation8] sm:$0x1] %vm96, %v91
    %98 = vst.msk [vmem:[#allocation8 + $0x1] sm:$0x1] %vm96, %v95
    %s99 = sld [smem:[#allocation2]]
    %v100 = vstv %s99
    %v101 = vmul.f32 %v91, %v100
    %v102 = vmul.f32 %v95, %v100
    %v103 = vmul.f32 %v101, %v101
    %v104 = vsub.f32 %v102, %v103
    %v105 = vmax.f32 %v104, 0.01
    %v106 = vrsqrt.pop %v105
    %108 = vrot.lane.b32.xlu0 %v101, 32
    %v109 = vpop.permute.xlu0 %108
    %111 = vrot.lane.b32.xlu0 %v101, 64
    %v112 = vpop.permute.xlu0 %111
    %114 = vrot.lane.b32.xlu0 %v101, 96
    %v115 = vpop.permute.xlu0 %114
    %vm117 = vcmask 261120
    %v118 = vsel %vm117, %v101, %v109
    %vm119 = vcmask 523264
    %v120 = vsel %vm119, %v118, %v112
    %vm121 = vcmask 785408
    %v122 = vsel %vm121, %v120, %v115
    %124 = vrot.lane.b32.xlu0 %v106, 32
    %v125 = vpop.permute.xlu0 %124
    %127 = vrot.lane.b32.xlu0 %v106, 64
    %v128 = vpop.permute.xlu0 %127
    %130 = vrot.lane.b32.xlu0 %v106, 96
    %v131 = vpop.permute.xlu0 %130
    %v133 = vsel %vm117, %v106, %v125
    %v134 = vsel %vm119, %v133, %v128
    %v135 = vsel %vm121, %v134, %v131
    %v136 = vlaneseq
    %v137 = vshrl.u32 %v136, 7
    %v138 = vsub.s32 0, %v137
    %v139 = vrot.slane %v122, %v138
    %v140 = vsub.f32 %v43, %v139
    %v141 = vlaneseq
    %v142 = vshrl.u32 %v141, 7
    %v143 = vsub.s32 0, %v142
    %v144 = vrot.slane %v135, %v143
    %v145 = vmul.f32 %v140, %v144
    %146 = vst [vmem:[#allocation9] sm:$0x3] %v145
    // Predicated region
    $region22: #{tpu_custom_call.1} parent=1 // pred_check
      _
    $region23: #{tpu_custom_call.1} parent=1 // pred_check_branch
      %148 = sbr.rel (0) target = $region25
    $region24: #{tpu_custom_call.1} parent=1 // pred_region
      %s150 = ssub.s32 32, 32
      %151 = vsyncadd [#allocation5], %s150
      %s153 = sshll.u32 [#allocation8], 4
      %s154 = int_to_ptr.vmem [resolvable:$true] %s153
      %156 = dma.vmem_to_hbm [thread:$0]  %s154, 32, %s3, [#allocation5]
    $region25: #{tpu_custom_call.1} parent=1 // pred_fallthru
      _
    // Predicated region
    $region26: #{tpu_custom_call.1} parent=1 // pred_check
      _
    $region27: #{tpu_custom_call.1} parent=1 // pred_check_branch
      %158 = sbr.rel (0) target = $region29
    $region28: #{tpu_custom_call.1} parent=1 // pred_region
      %s160 = ssub.s32 32, 32
      %161 = vsyncadd [#allocation10], %s160
      %s163 = sshll.u32 [#allocation9], 4
      %s164 = int_to_ptr.vmem [resolvable:$true] %s163
      %166 = dma.vmem_to_hbm [thread:$0]  %s164, 32, %s4, [#allocation10]
    $region29: #{tpu_custom_call.1} parent=1 // pred_fallthru
      _
    // Predicated region
    $region30: #{tpu_custom_call.1} parent=1 // pred_check
      _
    $region31: #{tpu_custom_call.1} parent=1 // pred_check_branch
      %168 = sbr.rel (0) target = $region33
    $region32: #{tpu_custom_call.1} parent=1 // pred_region
      %169 = dma.done [#allocation5], 32
    $region33: #{tpu_custom_call.1} parent=1 // pred_fallthru
      _
    // Predicated region
    $region34: #{tpu_custom_call.1} parent=1 // pred_check
      _
    $region35: #{tpu_custom_call.1} parent=1 // pred_check_branch
      %171 = sbr.rel (0) target = $region37
    $region36: #{tpu_custom_call.1} parent=1 // pred_region
      %172 = dma.done [#allocation10], 32
    $region37: #{tpu_custom_call.1} parent=1 // pred_fallthru
      _
    %173 = vsyncpa [#allocation4], 1
    %174 = vsyncpa [#allocation7], 1
    %175 = vsyncpa [#allocation5], 1
    %176 = vsyncpa [#allocation10], 1

</llo_original>
